<compile_context>
chip_gen: v6e
topology: v6e:2x2x1
jax: 0.10.0
libtpu: 0.0.40
codegen_flags: <defaults>
</compile_context>

<pallas_src>
import numpy as np
import jax
import jax.numpy as jnp
from jax.experimental import pallas as pl
from jax.experimental.pallas import tpu as pltpu

_LANE = 128


def _round_up(x, m):
    return ((x + m - 1) // m) * m


def _pick_tile(total, target, unit=_LANE):
    """Largest multiple of `unit` that divides `total` and is <= target."""
    best = unit
    d = unit
    lim = min(total, target)
    while d <= lim:
        if total % d == 0:
            best = d
        d += unit
    return best


# -----------------------------------------------------------------------------
# Kernels
# -----------------------------------------------------------------------------
def _linear_kernel_f32_out(x_ref, w_ref, b_ref, o_ref):
    """x:(tm,tk), w:(tk,tn) compute dtype, b:(1,tn) f32, o:(tm,tn) f32.
    The f32 output block is resident across the k axis and doubles as the
    accumulator (no scratch, no final copy)."""
    k = pl.program_id(2)

    @pl.when(k == 0)
    def _():
        o_ref[...] = jnp.broadcast_to(b_ref[...], o_ref.shape)

    o_ref[...] += jnp.dot(x_ref[...].astype(w_ref.dtype), w_ref[...],
                          preferred_element_type=jnp.float32)


def _linear_kernel_acc(x_ref, w_ref, b_ref, o_ref, acc_ref):
    """Same contraction but with an f32 scratch accumulator (non-f32 outputs)."""
    k = pl.program_id(2)

    @pl.when(k == 0)
    def _():
        acc_ref[...] = jnp.broadcast_to(b_ref[...], acc_ref.shape)

    acc_ref[...] += jnp.dot(x_ref[...].astype(w_ref.dtype), w_ref[...],
                            preferred_element_type=jnp.float32)

    @pl.when(k == pl.num_programs(2) - 1)
    def _():
        o_ref[...] = acc_ref[...].astype(o_ref.dtype)


# -----------------------------------------------------------------------------
# One-time parameter preparation (hoisted out of the per-call path)
# -----------------------------------------------------------------------------
def prepare_attn_fusion_params(weight, bias, *, compute_dtype=None):
    """weight: (D_out, D_in) PyTorch layout; bias: (D,).

    Returns pre-transposed (D_in, D_out), lane-padded, compute-dtype weight and
    an f32 padded bias. Do this once per model, not per forward call.
    """
    D_out, D_in = weight.shape
    assert D_out == D_in, "attn_fusion uses a square projection"
    D = D_in
    if compute_dtype is None:
        compute_dtype = weight.dtype
    Dp = _round_up(D, _LANE)

    w_t = weight.T.astype(compute_dtype)                 # (D_in, D_out)
    b = bias.astype(jnp.float32)
    if Dp != D:
        w_t = jnp.pad(w_t, ((0, Dp - D), (0, Dp - D)))   # zero pad: exact
        b = jnp.pad(b, (0, Dp - D))
    return {"w_t": w_t, "b": b.reshape(1, Dp), "D": D, "Dp": Dp}


# -----------------------------------------------------------------------------
# Forward
# -----------------------------------------------------------------------------
def attn_fusion_forward(attn_output, params, *, tm=None, tn=None, tk=None,
                        vmem_budget_bytes=48 * 1024 * 1024):
    """attn_output: (..., D) — x stays in its own dtype; any down-cast to the
    MXU compute dtype (params['w_t'].dtype) happens inside the kernel."""
    w_t, b2d = params["w_t"], params["b"]
    D, Dp = params["D"], params["Dp"]
    lead = attn_output.shape[:-1]
    out_dtype = attn_output.dtype

    x2d = attn_output.reshape(-1, D)
    M = x2d.shape[0]

    x_bytes = np.dtype(x2d.dtype).itemsize
    w_bytes = np.dtype(w_t.dtype).itemsize
    out_bytes = np.dtype(out_dtype).itemsize
    f32_out = np.dtype(out_dtype) == np.dtype(jnp.float32)

    # Sublane multiple: 16 when any 16-bit dtype participates, else 8.
    sub = 16 if min(x_bytes, w_bytes, out_bytes) == 2 else 8

    # --- tile selection -------------------------------------------------------
    tm = 512 if tm is None else tm
    tm = min(tm, _round_up(M, sub))
    tn = _pick_tile(Dp, Dp if tn is None else tn) if tn is not None else _pick_tile(Dp, 512)
    tk = _pick_tile(Dp, min(Dp, 2048) if tk is None else tk)
    Mp = _round_up(M, tm)

    # v7x megacore: with a single M tile, keep >=2 blocks on the N axis so both
    # TensorCores get work. No effect on single-TC v5e/v6e.
    if Mp // tm == 1 and Dp // tn == 1 and Dp >= 2 * _LANE:
        tn = _pick_tile(Dp, Dp // 2)

    # Fit the double-buffered working set inside the VMEM budget.
    def _vmem_use(tm_, tn_, tk_):
        use = (2 * tm_ * tk_ * x_bytes        # x tiles
               + 2 * tk_ * tn_ * w_bytes      # W tiles
               + 2 * tm_ * tn_ * out_bytes    # out tiles
               + 2 * tn_ * 4)                 # bias tiles
        if not f32_out:
            use += tm_ * tn_ * 4              # f32 accumulator scratch
        return use

    while _vmem_use(tm, tn, tk) > vmem_budget_bytes:
        if tk > _LANE:
            tk = _pick_tile(Dp, tk // 2)
        elif tn > _LANE:
            tn = _pick_tile(Dp, tn // 2)
        elif tm > sub:
            tm = max(sub, tm // 2)
            Mp = _round_up(M, tm)
        else:
            break

    vmem_limit = int(min(100 * 1024 * 1024,
                         max(32 * 1024 * 1024, 1.5 * _vmem_use(tm, tn, tk))))

    # --- pad activations (zero pad on K is exact; pad rows sliced off) --------
    if Mp != M or Dp != D:
        x2d = jnp.pad(x2d, ((0, Mp - M), (0, Dp - D)))

    grid = (Mp // tm, Dp // tn, Dp // tk)

    kernel = _linear_kernel_f32_out if f32_out else _linear_kernel_acc
    scratch = [] if f32_out else [pltpu.VMEM((tm, tn), jnp.float32)]

    cost = pl.CostEstimate(
        flops=2 * Mp * Dp * Dp,
        transcendentals=0,
        bytes_accessed=((Dp // tn) * Mp * Dp * x_bytes     # x re-read per N tile
                        + (Mp // tm) * Dp * Dp * w_bytes   # W re-read per M tile
                        + (Mp // tm) * Dp * 4              # bias re-read
                        + Mp * Dp * out_bytes))            # output write

    out = pl.pallas_call(
        kernel,
        out_shape=jax.ShapeDtypeStruct((Mp, Dp), out_dtype),
        grid_spec=pltpu.PrefetchScalarGridSpec(
            num_scalar_prefetch=0,
            grid=grid,
            in_specs=[
                pl.BlockSpec((tm, tk), lambda i, j, k: (i, k)),   # x tile
                pl.BlockSpec((tk, tn), lambda i, j, k: (k, j)),   # W^T tile (in,out)
                pl.BlockSpec((1, tn), lambda i, j, k: (0, j)),    # bias tile
            ],
            out_specs=pl.BlockSpec((tm, tn), lambda i, j, k: (i, j)),
            scratch_shapes=scratch,
        ),
        compiler_params=pltpu.CompilerParams(
            dimension_semantics=("parallel", "parallel", "arbitrary"),
            vmem_limit_bytes=vmem_limit,
        ),
        cost_estimate=cost,
    )(x2d, w_t, b2d)

    return out[:M, :D].reshape(*lead, D)


if __name__ == "__main__":
    # Deterministic parameters + inputs (synthetic; no checkpoint load).
    key = jax.random.PRNGKey(0)
    k_x, k_w, k_b = jax.random.split(key, 3)

    batch, seq, attn_out_dim = 2, 8, 32
    x = jax.random.normal(k_x, (batch, seq, attn_out_dim), dtype=jnp.float32)

    # nn.Linear(attn_out_dim, attn_out_dim): weight (out, in), bias (out,)
    bound = 1.0 / (attn_out_dim ** 0.5)
    weight = jax.random.uniform(k_w, (attn_out_dim, attn_out_dim),
                                minval=-bound, maxval=bound, dtype=jnp.float32)
    bias = jax.random.uniform(k_b, (attn_out_dim,),
                              minval=-bound, maxval=bound, dtype=jnp.float32)

    ref = x @ weight.T + bias

    # f32 path: exact-tolerance check.
    params_f32 = prepare_attn_fusion_params(weight, bias)
    out = attn_fusion_forward(x, params_f32)
    out = jax.block_until_ready(out)
    assert out.shape == (batch, seq, attn_out_dim)
    assert jnp.allclose(out, ref, atol=1e-5, rtol=1e-5)

    # bf16 MXU path: weight pre-cast once; x cast to bf16 inside the kernel;
    # f32 accumulation into the f32 output block. Looser tolerance.
    params_bf16 = prepare_attn_fusion_params(weight, bias,
                                             compute_dtype=jnp.bfloat16)
    out_bf16 = attn_fusion_forward(x, params_bf16)
    out_bf16 = jax.block_until_ready(out_bf16)
    assert jnp.allclose(out_bf16, ref, atol=5e-2, rtol=5e-2)

    print("KERNEL_OK")
</pallas_src>

<mosaic_0001>
module attributes {stable_mosaic.version = 11 : i64} {
  func.func @_linear_kernel_f32_out(%arg0: i32, %arg1: i32, %arg2: i32, %arg3: memref<16x128xf32, #tpu.memory_space<vmem>>, %arg4: memref<128x128xf32, #tpu.memory_space<vmem>>, %arg5: memref<1x128xf32, #tpu.memory_space<vmem>>, %arg6: memref<16x128xf32, #tpu.memory_space<vmem>>) attributes {dimension_semantics = [#tpu.dimension_semantics<parallel>, #tpu.dimension_semantics<parallel>, #tpu.dimension_semantics<arbitrary>], iteration_bounds = array<i64: 1, 1, 1>, scalar_prefetch = 0 : i64, scratch_operands = 0 : i64, tpu.core_type = #tpu.core_type<tc>, window_params = [{transform_indices = @transform_0, window_bounds = array<i64: 16, 128>}, {transform_indices = @transform_1, window_bounds = array<i64: 128, 128>}, {transform_indices = @transform_2, window_bounds = array<i64: 1, 128>}, {transform_indices = @transform_3, window_bounds = array<i64: 16, 128>}]} {
    %c0_i32 = arith.constant 0 : i32
    %0 = arith.cmpi eq, %arg2, %c0_i32 : i32
    %1 = arith.extui %0 : i1 to i32
    %c0_i32_0 = arith.constant 0 : i32
    %2 = arith.cmpi ne, %1, %c0_i32_0 : i32
    scf.if %2 {
      %c0_8 = arith.constant 0 : index
      %c0_9 = arith.constant 0 : index
      %9 = vector.load %arg5[%c0_8, %c0_9] : memref<1x128xf32, #tpu.memory_space<vmem>>, vector<1x128xf32>
      %10 = vector.shape_cast %9 : vector<1x128xf32> to vector<1x128xf32>
      %11 = vector.broadcast %10 : vector<1x128xf32> to vector<16x128xf32>
      %c0_10 = arith.constant 0 : index
      %c0_11 = arith.constant 0 : index
      %12 = vector.load %arg6[%c0_10, %c0_11] : memref<16x128xf32, #tpu.memory_space<vmem>>, vector<16x128xf32>
      tpu.vector_store %arg6[%c0_10, %c0_11], %11 {strides = array<i32>} : memref<16x128xf32, #tpu.memory_space<vmem>>, vector<16x128xf32>,
    } else {
    }
    %c0 = arith.constant 0 : index
    %c0_1 = arith.constant 0 : index
    %3 = vector.load %arg6[%c0, %c0_1] : memref<16x128xf32, #tpu.memory_space<vmem>>, vector<16x128xf32>
    %c0_2 = arith.constant 0 : index
    %c0_3 = arith.constant 0 : index
    %4 = vector.load %arg3[%c0_2, %c0_3] : memref<16x128xf32, #tpu.memory_space<vmem>>, vector<16x128xf32>
    %c0_4 = arith.constant 0 : index
    %c0_5 = arith.constant 0 : index
    %5 = vector.load %arg4[%c0_4, %c0_5] : memref<128x128xf32, #tpu.memory_space<vmem>>, vector<128x128xf32>
    %cst = arith.constant dense<0.000000e+00> : vector<16x128xf32>
    %6 = tpu.matmul %4, %5, %cst {dimension_numbers = #tpu.dot_dimension_numbers<[1], [0], [0], [1], [0, 0, 1, 1], [], []>} : vector<16x128xf32>, vector<128x128xf32>, vector<16x128xf32> -> vector<16x128xf32>
    %7 = arith.addf %3, %6 : vector<16x128xf32>
    %c0_6 = arith.constant 0 : index
    %c0_7 = arith.constant 0 : index
    %8 = vector.load %arg6[%c0_6, %c0_7] : memref<16x128xf32, #tpu.memory_space<vmem>>, vector<16x128xf32>
    tpu.vector_store %arg6[%c0_6, %c0_7], %7 {strides = array<i32>} : memref<16x128xf32, #tpu.memory_space<vmem>>, vector<16x128xf32>,
    return
  }
  func.func @transform_0(%arg0: i32, %arg1: i32, %arg2: i32) -> (i32, i32) {
    %c0_i32 = arith.constant 0 : i32
    return %arg0, %arg2 : i32, i32
  }
  func.func @transform_1(%arg0: i32, %arg1: i32, %arg2: i32) -> (i32, i32) {
    %c0_i32 = arith.constant 0 : i32
    return %arg2, %arg1 : i32, i32
  }
  func.func @transform_2(%arg0: i32, %arg1: i32, %arg2: i32) -> (i32, i32) {
    %c0_i32 = arith.constant 0 : i32
    %c0_i32_0 = arith.constant 0 : i32
    return %c0_i32, %arg1 : i32, i32
  }
  func.func @transform_3(%arg0: i32, %arg1: i32, %arg2: i32) -> (i32, i32) {
    %c0_i32 = arith.constant 0 : i32
    return %arg0, %arg1 : i32, i32
  }
}

</mosaic_0001>

<llo_original>
// kernel: tpu_custom_call.1
$region0: #{tpu_custom_call.1}
  #allocation0 [shape = 'u32[]', space=smem, size = 0x4, offset = 0x4, fixed_abs, tag = 'smem constant byte address 0x4 - core index']
  #allocation1 [shape = 'u32[144,128]{1,0:T(1,128)}', space=vmem, size = 0x12000, scoped, tag = 'internal scratch']
  %s0 = inlined_call_operand.hbm [shape: f32[16,128], index: 0, kind: input, shape index: {}]
  %s1 = inlined_call_operand.hbm [shape: f32[128,128], index: 1, kind: input, shape index: {}]
  %s2 = inlined_call_operand.vmem [shape: f32[1,128], index: 2, kind: input, shape index: {}]
  %s3 = inlined_call_operand.hbm [shape: f32[16,128], index: 3, kind: output, shape index: {}]
  %s4 = sld [smem:[#allocation0]]
  $region34: #{tpu_custom_call.1} parent=0
    _
  %s6 = ssub.s32 1, %s4
  %s7 = scalar_select 0, %s6, %s4
  $region1: #{tpu_custom_call.1} parent=0
    #allocation2 [shape = 'u8[8192]{0}', space=vmem, size = 0x2000, scoped, tag = 'input window, operand 0, single buffered']
    #allocation3 [shape = 's32[1]{0}', space=sflag, size = 0x4, scoped, tag = 'scoped memory for tpu_custom_call.1']
    #allocation4 [shape = 's32[1]{0}', space=sflag, size = 0x4, scoped, tag = 'scoped memory for tpu_custom_call.1']
    #allocation5 [shape = 'u8[65536]{0}', space=vmem, size = 0x10000, scoped, tag = 'input window, operand 1, single buffered']
    #allocation6 [shape = 's32[1]{0}', space=sflag, size = 0x4, scoped, tag = 'scoped memory for tpu_custom_call.1']
    #allocation7 [shape = 'u8[8192]{0}', space=vmem, size = 0x2000, scoped, tag = 'output window, operand 0, single buffered']
    %8 = vsyncpa [#allocation3], 0
    %9 = vsyncpa [#allocation6], 0
    %10 = vsyncpa [#allocation4], 0
    // Predicated region
    $region2: #{tpu_custom_call.1} parent=1 // pred_check
      _
    $region3: #{tpu_custom_call.1} parent=1 // pred_check_branch
      %12 = sbr.rel (0) target = $region5
    $region4: #{tpu_custom_call.1} parent=1 // pred_region
      %s14 = ssub.s32 256, 256
      %15 = vsyncadd [#allocation3], %s14
      %s16 = sshll.u32 [#allocation2], 4
      %s17 = int_to_ptr.vmem [resolvable:$true] %s16
      %22 = dma.hbm_to_vmem [thread:$0]  %s0, 256, %s17, [#allocation3], 128, 128, 8
    $region5: #{tpu_custom_call.1} parent=1 // pred_fallthru
      _
    // Predicated region
    $region6: #{tpu_custom_call.1} parent=1 // pred_check
      _
    $region7: #{tpu_custom_call.1} parent=1 // pred_check_branch
      %24 = sbr.rel (0) target = $region9
    $region8: #{tpu_custom_call.1} parent=1 // pred_region
      %s26 = ssub.s32 2048, 2048
      %27 = vsyncadd [#allocation6], %s26
      %s28 = sshll.u32 [#allocation5], 4
      %s29 = int_to_ptr.vmem [resolvable:$true] %s28
      %34 = dma.hbm_to_vmem [thread:$0]  %s1, 2048, %s29, [#allocation6], 128, 128, 8
    $region9: #{tpu_custom_call.1} parent=1 // pred_fallthru
      _
    // Predicated region
    $region10: #{tpu_custom_call.1} parent=1 // pred_check
      _
    $region11: #{tpu_custom_call.1} parent=1 // pred_check_branch
      %36 = sbr.rel (0) target = $region13
    $region12: #{tpu_custom_call.1} parent=1 // pred_region
      _
    $region13: #{tpu_custom_call.1} parent=1 // pred_fallthru
      _
    // Predicated region
    $region14: #{tpu_custom_call.1} parent=1 // pred_check
      _
    $region15: #{tpu_custom_call.1} parent=1 // pred_check_branch
      %38 = sbr.rel (0) target = $region17
    $region16: #{tpu_custom_call.1} parent=1 // pred_region
      %39 = dma.done [#allocation3], 256
    $region17: #{tpu_custom_call.1} parent=1 // pred_fallthru
      _
    // Predicated region
    $region18: #{tpu_custom_call.1} parent=1 // pred_check
      _
    $region19: #{tpu_custom_call.1} parent=1 // pred_check_branch
      %41 = sbr.rel (0) target = $region21
    $region20: #{tpu_custom_call.1} parent=1 // pred_region
      %42 = dma.done [#allocation6], 2048
    $region21: #{tpu_custom_call.1} parent=1 // pred_fallthru
      _
    %p43 = scmp.eq.s32.totalorder 0, 0
    // Predicated region
    $region22: #{tpu_custom_call.1} parent=1 // pred_check
      %p44 = pneg %p43
    $region23: #{tpu_custom_call.1} parent=1 // pred_check_branch
      %46 = sbr.rel (%p44) target = $region25
    $region24: #{tpu_custom_call.1} parent=1 // pred_region
      %v47 = vld [vmem:[%s2] sm:$0x1]
      %v49 = vlaneseq
      %v50 = vshrl.u32 %v49, 7
      %v51 = vsub.s32 0, %v50
      %v52 = vrot.slane %v47, %v51
      %54 = vst [vmem:[#allocation7] sm:$0xff] %v52
      %55 = vst [vmem:[#allocation7 + $0x8] sm:$0xff] %v52
    $region25: #{tpu_custom_call.1} parent=1 // pred_fallthru
      _
    %v56 = vld [vmem:[#allocation7] sm:$0xff]
    %v57 = vld [vmem:[#allocation7 + $0x8] sm:$0xff]
    %v58 = vld [vmem:[#allocation2] sm:$0xff]
    %v59 = vld [vmem:[#allocation2 + $0x8] sm:$0xff]
    %v60 = vld [vmem:[#allocation5] sm:$0xff]
    %v61 = vld [vmem:[#allocation5 + $0x8] sm:$0xff]
    %v62 = vld [vmem:[#allocation5 + $0x10] sm:$0xff]
    %v63 = vld [vmem:[#allocation5 + $0x18] sm:$0xff]
    %v64 = vld [vmem:[#allocation5 + $0x20] sm:$0xff]
    %v65 = vld [vmem:[#allocation5 + $0x28] sm:$0xff]
    %v66 = vld [vmem:[#allocation5 + $0x30] sm:$0xff]
    %v67 = vld [vmem:[#allocation5 + $0x38] sm:$0xff]
    %v68 = vld [vmem:[#allocation5 + $0x40] sm:$0xff]
    %v69 = vld [vmem:[#allocation5 + $0x48] sm:$0xff]
    %v70 = vld [vmem:[#allocation5 + $0x50] sm:$0xff]
    %v71 = vld [vmem:[#allocation5 + $0x58] sm:$0xff]
    %v72 = vld [vmem:[#allocation5 + $0x60] sm:$0xff]
    %v73 = vld [vmem:[#allocation5 + $0x68] sm:$0xff]
    %v74 = vld [vmem:[#allocation5 + $0x70] sm:$0xff]
    %v75 = vld [vmem:[#allocation5 + $0x78] sm:$0xff]
    %76 = vmatprep.subr.mxu0 0.0
    %77 = vmatpush1.msra.mxu0 %v75
    %78 = vmatprep.subr.mxu0 0.0
    %79 = vmatpush1.msra.mxu0 %v74
    %80 = vmatprep.subr.mxu0 0.0
    %81 = vmatpush1.msra.mxu0 %v73
    %82 = vmatprep.subr.mxu0 0.0
    %83 = vmatpush1.msra.mxu0 %v72
    %84 = vmatprep.subr.mxu0 0.0
    %85 = vmatpush1.msra.mxu0 %v71
    %86 = vmatprep.subr.mxu0 0.0
    %87 = vmatpush1.msra.mxu0 %v70
    %88 = vmatprep.subr.mxu0 0.0
    %89 = vmatpush1.msra.mxu0 %v69
    %90 = vmatprep.subr.mxu0 0.0
    %91 = vmatpush1.msra.mxu0 %v68
    %92 = vmatprep.subr.mxu0 0.0
    %93 = vmatpush1.msra.mxu0 %v67
    %94 = vmatprep.subr.mxu0 0.0
    %95 = vmatpush1.msra.mxu0 %v66
    %96 = vmatprep.subr.mxu0 0.0
    %97 = vmatpush1.msra.mxu0 %v65
    %98 = vmatprep.subr.mxu0 0.0
    %99 = vmatpush1.msra.mxu0 %v64
    %100 = vmatprep.subr.mxu0 0.0
    %101 = vmatpush1.msra.mxu0 %v63
    %102 = vmatprep.subr.mxu0 0.0
    %103 = vmatpush1.msra.mxu0 %v62
    %104 = vmatprep.subr.mxu0 0.0
    %105 = vmatpush1.msra.mxu0 %v61
    %106 = vmatprep.subr.mxu0 0.0
    %107 = vmatpush1.msra.mxu0 %v60
    %108 = vmatprep.subr.mxu0 0.0
    %109 = vmatpush2.msra.mxu0 0.0
    %110 = vmatprep.subr.mxu0 0.0
    %111 = vmatpush2.msra.mxu0 0.0
    %112 = vmatprep.subr.mxu0 0.0
    %113 = vmatpush2.msra.mxu0 0.0
    %114 = vmatprep.subr.mxu0 0.0
    %115 = vmatpush2.msra.mxu0 0.0
    %116 = vmatprep.subr.mxu0 0.0
    %117 = vmatpush2.msra.mxu0 0.0
    %118 = vmatprep.subr.mxu0 0.0
    %119 = vmatpush2.msra.mxu0 0.0
    %120 = vmatprep.subr.mxu0 0.0
    %121 = vmatpush2.msra.mxu0 0.0
    %122 = vmatprep.subr.mxu0 0.0
    %123 = vmatpush2.msra.mxu0 0.0
    %124 = vmatprep.subr.mxu0 0.0
    %125 = vmatpush2.msra.mxu0 0.0
    %126 = vmatprep.subr.mxu0 0.0
    %127 = vmatpush2.msra.mxu0 0.0
    %128 = vmatprep.subr.mxu0 0.0
    %129 = vmatpush2.msra.mxu0 0.0
    %130 = vmatprep.subr.mxu0 0.0
    %131 = vmatpush2.msra.mxu0 0.0
    %132 = vmatprep.subr.mxu0 0.0
    %133 = vmatpush2.msra.mxu0 0.0
    %134 = vmatprep.subr.mxu0 0.0
    %135 = vmatpush2.msra.mxu0 0.0
    %136 = vmatprep.subr.mxu0 0.0
    %137 = vmatpush2.msra.mxu0 0.0
    %138 = vmatprep.subr.mxu0 0.0
    %139 = vmatpush2.msra.mxu0 0.0
    %140 = vmatprep.mubr.f32.mxu0 0.0
    %141 = vmatmul.mubr.f32.gmra.mxu0 %v58
    %v142 = vpop.f32.mrf.mxu0
    %v143 = vadd.f32 0.0, %v142
    %v144 = vpop.f32.mrf.mxu0
    %145 = vmatprep.mubr.f32.mxu0 0.0
    %146 = vmatmul.mubr.f32.gmra.mxu0 %v59
    %v147 = vpop.f32.mrf.mxu0
    %v148 = vadd.f32 0.0, %v147
    %v149 = vpop.f32.mrf.mxu0
    %150 = vdwg.mxu0
    %v151 = vadd.f32 %v56, %v143
    %v152 = vadd.f32 %v57, %v148
    %153 = vst [vmem:[#allocation7] sm:$0xff] %v151
    %154 = vst [vmem:[#allocation7 + $0x8] sm:$0xff] %v152
    // Predicated region
    $region26: #{tpu_custom_call.1} parent=1 // pred_check
      _
    $region27: #{tpu_custom_call.1} parent=1 // pred_check_branch
      %156 = sbr.rel (0) target = $region29
    $region28: #{tpu_custom_call.1} parent=1 // pred_region
      %s158 = ssub.s32 256, 256
      %159 = vsyncadd [#allocation4], %s158
      %s160 = sshll.u32 [#allocation7], 4
      %s161 = int_to_ptr.vmem [resolvable:$true] %s160
      %166 = dma.vmem_to_hbm [thread:$0]  %s161, 256, %s3, [#allocation4], 128, 128, 8
    $region29: #{tpu_custom_call.1} parent=1 // pred_fallthru
      _
    // Predicated region
    $region30: #{tpu_custom_call.1} parent=1 // pred_check
      _
    $region31: #{tpu_custom_call.1} parent=1 // pred_check_branch
      %168 = sbr.rel (0) target = $region33
    $region32: #{tpu_custom_call.1} parent=1 // pred_region
      %169 = dma.done [#allocation4], 256
    $region33: #{tpu_custom_call.1} parent=1 // pred_fallthru
      _
    %170 = vsyncpa [#allocation3], 1
    %171 = vsyncpa [#allocation6], 1
    %172 = vsyncpa [#allocation4], 1

</llo_original>
